<compile_context>
chip_gen: v6e
topology: v6e:2x2x1
jax: 0.10.0
libtpu: 0.0.40
codegen_flags: <defaults>
</compile_context>

<pallas_src>
import functools

import jax
import jax.numpy as jnp
from jax.experimental import pallas as pl
from jax.experimental.pallas import tpu as pltpu


def _label_smoothing_kernel(tgt_ref, out_ref, *, tile_v, padding_idx,
                            smooth_val, confidence):
    # tgt_ref: (tile_n, 1) int32   -- targets for this row tile
    # out_ref: (tile_n, tile_v)    -- output block at (row tile i, vocab tile j)
    j = pl.program_id(1)
    tgt = tgt_ref[...]                                     # (tile_n, 1)
    is_pad_row = tgt == padding_idx                        # (tile_n, 1)

    # Fold "zero whole pad rows" into the per-row select operands: the
    # full-tile work is then a single compare + select per vreg.
    conf_row = jnp.where(is_pad_row, 0.0, confidence)      # (tile_n, 1)
    smooth_row = jnp.where(is_pad_row, 0.0, smooth_val)    # (tile_n, 1)

    # Keep the iota tile-local; shift the (tile_n,1) scalar side instead of
    # adding j*tile_v to every output element.
    tgt_local = tgt - j * tile_v                           # (tile_n, 1)
    col_local = jax.lax.broadcasted_iota(jnp.int32, out_ref.shape, 1)

    td = jnp.where(col_local == tgt_local, conf_row, smooth_row)

    # Only one vocab tile per row-tile contains the padding column; gate the
    # extra compare+select on it instead of paying it on every tile.
    pad_tile_j = padding_idx // tile_v   # static Python int
    pad_local = padding_idx % tile_v     # static Python int

    @pl.when(j != pad_tile_j)
    def _():
        out_ref[...] = td.astype(out_ref.dtype)

    @pl.when(j == pad_tile_j)
    def _():
        td_pad = jnp.where(col_local == pad_local, 0.0, td)
        out_ref[...] = td_pad.astype(out_ref.dtype)


def _sublane_align(dtype):
    """Minimum multiple for the second-to-last block dim, per packed layout."""
    return {4: 8, 2: 16, 1: 32}.get(jnp.dtype(dtype).itemsize, 8)


def _pick_tile(total, cap, align):
    """Full extent if it fits under `cap` (always a legal BlockSpec dim),
    otherwise the largest `align`-multiple <= cap.  Never falls back to the
    full extent for huge dims (keeps VMEM bounded for real vocab sizes)."""
    if total <= cap:
        return total
    return max((cap // align) * align, align)


def label_smoothing(x, target, *, size, padding_idx, smoothing=0.0,
                    max_tile_n=1024, max_tile_v=4096):
    """x: (N, V) float (shape/dtype template only), target: (N,) int ->
    true_dist: (N, V) float."""
    assert x.shape[1] == size
    assert size > 2, "label smoothing divides by (size - 2)"
    N, V = x.shape
    confidence = 1.0 - smoothing
    smooth_val = smoothing / (size - 2)
    tgt2d = target.astype(jnp.int32).reshape(N, 1)

    itemsize = jnp.dtype(x.dtype).itemsize
    tile_n = _pick_tile(N, max_tile_n, _sublane_align(x.dtype))  # sublane-aligned rows
    tile_v = _pick_tile(V, max_tile_v, 128)                      # lane-dense vocab tile
    grid = (pl.cdiv(N, tile_n), pl.cdiv(V, tile_v))

    # Explicit scoped-VMEM budget: double-buffered output tile + target tiles
    # + headroom.  Default f32 tiles (1024 x 4096 = 16 MiB) -> ~36 MiB, which
    # fits v7x's 64 MiB physical VMEM and is well inside v5e/v6e's 128 MiB.
    out_tile_bytes = tile_n * tile_v * itemsize
    tgt_tile_bytes = tile_n * 4
    vmem_limit = int(max(2 * (out_tile_bytes + tgt_tile_bytes) + (4 << 20),
                         16 << 20))

    kernel = functools.partial(
        _label_smoothing_kernel,
        tile_v=tile_v, padding_idx=padding_idx,
        smooth_val=smooth_val, confidence=confidence)

    return pl.pallas_call(
        kernel,
        out_shape=jax.ShapeDtypeStruct((N, V), x.dtype),
        grid_spec=pltpu.PrefetchScalarGridSpec(
            num_scalar_prefetch=0,
            grid=grid,
            in_specs=[
                # targets for row-tile i; same tile reused across all vocab tiles j
                pl.BlockSpec((tile_n, 1), lambda i, j: (i, 0)),
            ],
            out_specs=pl.BlockSpec((tile_n, tile_v), lambda i, j: (i, j)),
        ),
        compiler_params=pltpu.CompilerParams(
            dimension_semantics=("parallel", "parallel"),
            vmem_limit_bytes=vmem_limit),
    )(tgt2d)


def label_smoothing_ref(x, target, *, size, padding_idx, smoothing=0.0):
    """Pure-JAX reference mirroring the PyTorch forward."""
    confidence = 1.0 - smoothing
    N, V = x.shape
    col = jnp.arange(V)[None, :]
    tgt = target[:, None]
    td = jnp.full_like(x, smoothing / (size - 2))
    td = jnp.where(col == tgt, confidence, td)
    td = td.at[:, padding_idx].set(0.0)
    td = jnp.where(tgt == padding_idx, 0.0, td)
    return td


if __name__ == "__main__":
    # Small deterministic setup consistent with the module's forward:
    # N token positions, vocab size V (a multiple of 128 so stores are
    # full-lane, like real vocab sizes).
    SIZE = 256         # vocab size (== x.size(1)), multiple of 128
    PADDING_IDX = 0
    SMOOTHING = 0.1
    N = 64

    key = jax.random.PRNGKey(0)
    kx, kt = jax.random.split(key)
    x = jax.random.normal(kx, (N, SIZE), dtype=jnp.float32)
    target = jax.random.randint(kt, (N,), 0, SIZE, dtype=jnp.int32)
    # make sure at least one row hits the padding index (tests row zeroing)
    target = target.at[3].set(PADDING_IDX)

    ref = label_smoothing_ref(x, target, size=SIZE, padding_idx=PADDING_IDX,
                              smoothing=SMOOTHING)

    # 1) Default (large-tile) path: single block covering the whole array here.
    out = label_smoothing(x, target, size=SIZE, padding_idx=PADDING_IDX,
                          smoothing=SMOOTHING)
    out = jax.block_until_ready(out)
    assert out.shape == (N, SIZE) and out.dtype == x.dtype
    assert jnp.allclose(out, ref, atol=1e-6), "mismatch vs reference (1 block)"

    # 2) Force a 2x2 grid to exercise row/vocab tiling, the shifted iota, and
    #    the pl.when-gated padding-column tile.
    out_tiled = label_smoothing(x, target, size=SIZE, padding_idx=PADDING_IDX,
                                smoothing=SMOOTHING,
                                max_tile_n=32, max_tile_v=128)
    out_tiled = jax.block_until_ready(out_tiled)
    assert jnp.allclose(out_tiled, ref, atol=1e-6), "mismatch vs reference (tiled)"

    # 3) bf16 output to exercise the dtype-aware sublane alignment (tile_n
    #    becomes a multiple of 16).
    x_bf16 = x.astype(jnp.bfloat16)
    out_bf16 = label_smoothing(x_bf16, target, size=SIZE,
                               padding_idx=PADDING_IDX, smoothing=SMOOTHING,
                               max_tile_n=32, max_tile_v=128)
    out_bf16 = jax.block_until_ready(out_bf16)
    assert out_bf16.dtype == jnp.bfloat16
    assert jnp.allclose(out_bf16.astype(jnp.float32), ref, atol=5e-3), \
        "mismatch vs reference (bf16)"

    print("KERNEL_OK")
</pallas_src>

<mosaic_0001>
module attributes {stable_mosaic.version = 11 : i64} {
  func.func @_label_smoothing_kernel(%arg0: i32, %arg1: i32, %arg2: memref<64x1xi32, #tpu.memory_space<vmem>>, %arg3: memref<64x256xf32, #tpu.memory_space<vmem>>) attributes {dimension_semantics = [#tpu.dimension_semantics<parallel>, #tpu.dimension_semantics<parallel>], iteration_bounds = array<i64: 1, 1>, scalar_prefetch = 0 : i64, scratch_operands = 0 : i64, tpu.core_type = #tpu.core_type<tc>, window_params = [{transform_indices = @transform_0, window_bounds = array<i64: 64, 1>}, {transform_indices = @transform_1, window_bounds = array<i64: 64, 256>}]} {
    %c0 = arith.constant 0 : index
    %c0_0 = arith.constant 0 : index
    %0 = vector.load %arg2[%c0, %c0_0] : memref<64x1xi32, #tpu.memory_space<vmem>>, vector<64x1xi32>
    %c0_i32 = arith.constant 0 : i32
    %1 = vector.broadcast %c0_i32 : i32 to vector<64x1xi32>
    %2 = arith.cmpi eq, %0, %1 : vector<64x1xi32>
    %cst = arith.constant 0.000000e+00 : f32
    %cst_1 = arith.constant 0.899999976 : f32
    %3 = vector.broadcast %cst : f32 to vector<64x1xf32>
    %4 = vector.broadcast %cst_1 : f32 to vector<64x1xf32>
    %5 = arith.select %2, %3, %4 : vector<64x1xi1>, vector<64x1xf32>
    %cst_2 = arith.constant 0.000000e+00 : f32
    %cst_3 = arith.constant 3.93700786E-4 : f32
    %6 = vector.broadcast %cst_2 : f32 to vector<64x1xf32>
    %7 = vector.broadcast %cst_3 : f32 to vector<64x1xf32>
    %8 = arith.select %2, %6, %7 : vector<64x1xi1>, vector<64x1xf32>
    %c256_i32 = arith.constant 256 : i32
    %9 = arith.muli %arg1, %c256_i32 : i32
    %10 = vector.broadcast %9 : i32 to vector<64x1xi32>
    %11 = arith.subi %0, %10 : vector<64x1xi32>
    %12 = tpu.iota {dimensions = array<i32: 1>} : vector<64x256xi32>
    %13 = vector.broadcast %11 : vector<64x1xi32> to vector<64x256xi32>
    %14 = arith.cmpi eq, %12, %13 : vector<64x256xi32>
    %15 = vector.shape_cast %5 : vector<64x1xf32> to vector<64x1xf32>
    %16 = vector.broadcast %15 : vector<64x1xf32> to vector<64x256xf32>
    %17 = vector.shape_cast %8 : vector<64x1xf32> to vector<64x1xf32>
    %18 = vector.broadcast %17 : vector<64x1xf32> to vector<64x256xf32>
    %19 = arith.select %14, %16, %18 : vector<64x256xi1>, vector<64x256xf32>
    %c0_i32_4 = arith.constant 0 : i32
    %20 = arith.cmpi ne, %arg1, %c0_i32_4 : i32
    %21 = arith.extui %20 : i1 to i32
    %c0_i32_5 = arith.constant 0 : i32
    %22 = arith.cmpi ne, %21, %c0_i32_5 : i32
    scf.if %22 {
      %c0_8 = arith.constant 0 : index
      %c0_9 = arith.constant 0 : index
      %26 = vector.load %arg3[%c0_8, %c0_9] : memref<64x256xf32, #tpu.memory_space<vmem>>, vector<64x256xf32>
      tpu.vector_store %arg3[%c0_8, %c0_9], %19 {strides = array<i32>} : memref<64x256xf32, #tpu.memory_space<vmem>>, vector<64x256xf32>,
    } else {
    }
    %c0_i32_6 = arith.constant 0 : i32
    %23 = arith.cmpi eq, %arg1, %c0_i32_6 : i32
    %24 = arith.extui %23 : i1 to i32
    %c0_i32_7 = arith.constant 0 : i32
    %25 = arith.cmpi ne, %24, %c0_i32_7 : i32
    scf.if %25 {
      %c0_i32_8 = arith.constant 0 : i32
      %26 = vector.broadcast %c0_i32_8 : i32 to vector<64x256xi32>
      %27 = arith.cmpi eq, %12, %26 : vector<64x256xi32>
      %cst_9 = arith.constant 0.000000e+00 : f32
      %28 = vector.broadcast %cst_9 : f32 to vector<64x256xf32>
      %29 = arith.select %27, %28, %19 : vector<64x256xi1>, vector<64x256xf32>
      %c0_10 = arith.constant 0 : index
      %c0_11 = arith.constant 0 : index
      %30 = vector.load %arg3[%c0_10, %c0_11] : memref<64x256xf32, #tpu.memory_space<vmem>>, vector<64x256xf32>
      tpu.vector_store %arg3[%c0_10, %c0_11], %29 {strides = array<i32>} : memref<64x256xf32, #tpu.memory_space<vmem>>, vector<64x256xf32>,
    } else {
    }
    return
  }
  func.func @transform_0(%arg0: i32, %arg1: i32) -> (i32, i32) {
    %c0_i32 = arith.constant 0 : i32
    %c0_i32_0 = arith.constant 0 : i32
    return %arg0, %c0_i32 : i32, i32
  }
  func.func @transform_1(%arg0: i32, %arg1: i32) -> (i32, i32) {
    %c0_i32 = arith.constant 0 : i32
    return %arg0, %arg1 : i32, i32
  }
}

</mosaic_0001>

<llo_original>
// kernel: tpu_custom_call.1
$region0: #{tpu_custom_call.1}
  #allocation0 [shape = 'u32[]', space=smem, size = 0x4, offset = 0x4, fixed_abs, tag = 'smem constant byte address 0x4 - core index']
  #allocation1 [shape = 'u32[144,128]{1,0:T(1,128)}', space=vmem, size = 0x12000, scoped, tag = 'internal scratch']
  %s0 = inlined_call_operand.vmem [shape: s32[64,1], index: 0, kind: input, shape index: {}]
  %s1 = inlined_call_operand.hbm [shape: f32[64,256], index: 1, kind: output, shape index: {}]
  %s2 = sld [smem:[#allocation0]]
  $region22: #{tpu_custom_call.1} parent=0
    _
  %s4 = ssub.s32 1, %s2
  %s5 = scalar_select 0, %s4, %s2
  $region1: #{tpu_custom_call.1} parent=0
    #allocation2 [shape = 'u8[65536]{0}', space=vmem, size = 0x10000, scoped, tag = 'output window, operand 0, single buffered']
    #allocation3 [shape = 's32[1]{0}', space=sflag, size = 0x4, scoped, tag = 'scoped memory for tpu_custom_call.1']
    %6 = vsyncpa [#allocation3], 0
    // Predicated region
    $region2: #{tpu_custom_call.1} parent=1 // pred_check
      _
    $region3: #{tpu_custom_call.1} parent=1 // pred_check_branch
      %8 = sbr.rel (0) target = $region5
    $region4: #{tpu_custom_call.1} parent=1 // pred_region
      _
    $region5: #{tpu_custom_call.1} parent=1 // pred_fallthru
      _
    %v9 = vld [vmem:[%s0] sm:$0xff]
    %v10 = vld [vmem:[%s0 + $0x8] sm:$0xff]
    %v11 = vld [vmem:[%s0 + $0x10] sm:$0xff]
    %v12 = vld [vmem:[%s0 + $0x18] sm:$0xff]
    %v13 = vld [vmem:[%s0 + $0x20] sm:$0xff]
    %v14 = vld [vmem:[%s0 + $0x28] sm:$0xff]
    %v15 = vld [vmem:[%s0 + $0x30] sm:$0xff]
    %v16 = vld [vmem:[%s0 + $0x38] sm:$0xff]
    %vm17 = vcmp.eq.s32.totalorder %v9, 0
    %vm18 = vcmp.eq.s32.totalorder %v10, 0
    %vm19 = vcmp.eq.s32.totalorder %v11, 0
    %vm20 = vcmp.eq.s32.totalorder %v12, 0
    %vm21 = vcmp.eq.s32.totalorder %v13, 0
    %vm22 = vcmp.eq.s32.totalorder %v14, 0
    %vm23 = vcmp.eq.s32.totalorder %v15, 0
    %vm24 = vcmp.eq.s32.totalorder %v16, 0
    %v25 = vsel %vm17, 0.0, 0.9
    %v26 = vsel %vm18, 0.0, 0.9
    %v27 = vsel %vm19, 0.0, 0.9
    %v28 = vsel %vm20, 0.0, 0.9
    %v29 = vsel %vm21, 0.0, 0.9
    %v30 = vsel %vm22, 0.0, 0.9
    %v31 = vsel %vm23, 0.0, 0.9
    %v32 = vsel %vm24, 0.0, 0.9
    %v33 = vsel %vm17, 0.0, 0.0003937008
    %v34 = vsel %vm18, 0.0, 0.0003937008
    %v35 = vsel %vm19, 0.0, 0.0003937008
    %v36 = vsel %vm20, 0.0, 0.0003937008
    %v37 = vsel %vm21, 0.0, 0.0003937008
    %v38 = vsel %vm22, 0.0, 0.0003937008
    %v39 = vsel %vm23, 0.0, 0.0003937008
    %v40 = vsel %vm24, 0.0, 0.0003937008
    %s41 = smul.u32 0, 256
    %v42 = vstv %s41
    %v43 = vsub.s32 %v9, %v42
    %v44 = vsub.s32 %v10, %v42
    %v45 = vsub.s32 %v11, %v42
    %v46 = vsub.s32 %v12, %v42
    %v47 = vsub.s32 %v13, %v42
    %v48 = vsub.s32 %v14, %v42
    %v49 = vsub.s32 %v15, %v42
    %v50 = vsub.s32 %v16, %v42
    %v51 = vlaneseq
    %v52 = vand.u32 %v51, 127
    %v53 = vadd.s32 %v52, 128
    %54 = vset.pattern.permute.xlu0 0
    %55 = vperm.xlu0 %54, %v43
    %v56 = vpop.permute.xlu0 %55
    %57 = vset.pattern.permute.xlu0 0
    %58 = vperm.xlu0 %57, %v44
    %v59 = vpop.permute.xlu0 %58
    %60 = vset.pattern.permute.xlu0 0
    %61 = vperm.xlu0 %60, %v45
    %v62 = vpop.permute.xlu0 %61
    %63 = vset.pattern.permute.xlu0 0
    %64 = vperm.xlu0 %63, %v46
    %v65 = vpop.permute.xlu0 %64
    %66 = vset.pattern.permute.xlu0 0
    %67 = vperm.xlu0 %66, %v47
    %v68 = vpop.permute.xlu0 %67
    %69 = vset.pattern.permute.xlu0 0
    %70 = vperm.xlu0 %69, %v48
    %v71 = vpop.permute.xlu0 %70
    %72 = vset.pattern.permute.xlu0 0
    %73 = vperm.xlu0 %72, %v49
    %v74 = vpop.permute.xlu0 %73
    %75 = vset.pattern.permute.xlu0 0
    %76 = vperm.xlu0 %75, %v50
    %v77 = vpop.permute.xlu0 %76
    %vm78 = vcmp.eq.s32.totalorder %v52, %v56
    %vm79 = vcmp.eq.s32.totalorder %v53, %v56
    %vm80 = vcmp.eq.s32.totalorder %v52, %v59
    %vm81 = vcmp.eq.s32.totalorder %v53, %v59
    %vm82 = vcmp.eq.s32.totalorder %v52, %v62
    %vm83 = vcmp.eq.s32.totalorder %v53, %v62
    %vm84 = vcmp.eq.s32.totalorder %v52, %v65
    %vm85 = vcmp.eq.s32.totalorder %v53, %v65
    %vm86 = vcmp.eq.s32.totalorder %v52, %v68
    %vm87 = vcmp.eq.s32.totalorder %v53, %v68
    %vm88 = vcmp.eq.s32.totalorder %v52, %v71
    %vm89 = vcmp.eq.s32.totalorder %v53, %v71
    %vm90 = vcmp.eq.s32.totalorder %v52, %v74
    %vm91 = vcmp.eq.s32.totalorder %v53, %v74
    %vm92 = vcmp.eq.s32.totalorder %v52, %v77
    %vm93 = vcmp.eq.s32.totalorder %v53, %v77
    %95 = vset.pattern.permute.xlu0 0
    %96 = vperm.xlu0 %95, %v25
    %v97 = vpop.permute.xlu0 %96
    %100 = vset.pattern.permute.xlu0 0
    %101 = vperm.xlu0 %100, %v26
    %v102 = vpop.permute.xlu0 %101
    %105 = vset.pattern.permute.xlu0 0
    %106 = vperm.xlu0 %105, %v27
    %v107 = vpop.permute.xlu0 %106
    %110 = vset.pattern.permute.xlu0 0
    %111 = vperm.xlu0 %110, %v28
    %v112 = vpop.permute.xlu0 %111
    %115 = vset.pattern.permute.xlu0 0
    %116 = vperm.xlu0 %115, %v29
    %v117 = vpop.permute.xlu0 %116
    %120 = vset.pattern.permute.xlu0 0
    %121 = vperm.xlu0 %120, %v30
    %v122 = vpop.permute.xlu0 %121
    %125 = vset.pattern.permute.xlu0 0
    %126 = vperm.xlu0 %125, %v31
    %v127 = vpop.permute.xlu0 %126
    %130 = vset.pattern.permute.xlu0 0
    %131 = vperm.xlu0 %130, %v32
    %v132 = vpop.permute.xlu0 %131
    %135 = vset.pattern.permute.xlu0 0
    %136 = vperm.xlu0 %135, %v33
    %v137 = vpop.permute.xlu0 %136
    %140 = vset.pattern.permute.xlu0 0
    %141 = vperm.xlu0 %140, %v34
    %v142 = vpop.permute.xlu0 %141
    %145 = vset.pattern.permute.xlu0 0
    %146 = vperm.xlu0 %145, %v35
    %v147 = vpop.permute.xlu0 %146
    %150 = vset.pattern.permute.xlu0 0
    %151 = vperm.xlu0 %150, %v36
    %v152 = vpop.permute.xlu0 %151
    %155 = vset.pattern.permute.xlu0 0
    %156 = vperm.xlu0 %155, %v37
    %v157 = vpop.permute.xlu0 %156
    %160 = vset.pattern.permute.xlu0 0
    %161 = vperm.xlu0 %160, %v38
    %v162 = vpop.permute.xlu0 %161
    %165 = vset.pattern.permute.xlu0 0
    %166 = vperm.xlu0 %165, %v39
    %v167 = vpop.permute.xlu0 %166
    %170 = vset.pattern.permute.xlu0 0
    %171 = vperm.xlu0 %170, %v40
    %v172 = vpop.permute.xlu0 %171
    %v174 = vsel %vm78, %v97, %v137
    %v175 = vsel %vm79, %v97, %v137
    %v176 = vsel %vm80, %v102, %v142
    %v177 = vsel %vm81, %v102, %v142
    %v178 = vsel %vm82, %v107, %v147
    %v179 = vsel %vm83, %v107, %v147
    %v180 = vsel %vm84, %v112, %v152
    %v181 = vsel %vm85, %v112, %v152
    %v182 = vsel %vm86, %v117, %v157
    %v183 = vsel %vm87, %v117, %v157
    %v184 = vsel %vm88, %v122, %v162
    %v185 = vsel %vm89, %v122, %v162
    %v186 = vsel %vm90, %v127, %v167
    %v187 = vsel %vm91, %v127, %v167
    %v188 = vsel %vm92, %v132, %v172
    %v189 = vsel %vm93, %v132, %v172
    %p190 = scmp.ne.s32.totalorder 0, 0
    // Predicated region
    $region6: #{tpu_custom_call.1} parent=1 // pred_check
      %p191 = pneg %p190
    $region7: #{tpu_custom_call.1} parent=1 // pred_check_branch
      %193 = sbr.rel (%p191) target = $region9
    $region8: #{tpu_custom_call.1} parent=1 // pred_region
      %194 = vst [vmem:[#allocation2] sm:$0xff] %v174
      %195 = vst [vmem:[#allocation2 + $0x8] sm:$0xff] %v175
      %196 = vst [vmem:[#allocation2 + $0x10] sm:$0xff] %v176
      %197 = vst [vmem:[#allocation2 + $0x18] sm:$0xff] %v177
      %198 = vst [vmem:[#allocation2 + $0x20] sm:$0xff] %v178
      %199 = vst [vmem:[#allocation2 + $0x28] sm:$0xff] %v179
      %200 = vst [vmem:[#allocation2 + $0x30] sm:$0xff] %v180
      %201 = vst [vmem:[#allocation2 + $0x38] sm:$0xff] %v181
      %202 = vst [vmem:[#allocation2 + $0x40] sm:$0xff] %v182
      %203 = vst [vmem:[#allocation2 + $0x48] sm:$0xff] %v183
      %204 = vst [vmem:[#allocation2 + $0x50] sm:$0xff] %v184
      %205 = vst [vmem:[#allocation2 + $0x58] sm:$0xff] %v185
      %206 = vst [vmem:[#allocation2 + $0x60] sm:$0xff] %v186
      %207 = vst [vmem:[#allocation2 + $0x68] sm:$0xff] %v187
      %208 = vst [vmem:[#allocation2 + $0x70] sm:$0xff] %v188
      %209 = vst [vmem:[#allocation2 + $0x78] sm:$0xff] %v189
    $region9: #{tpu_custom_call.1} parent=1 // pred_fallthru
      _
    %p210 = scmp.eq.s32.totalorder 0, 0
    // Predicated region
    $region10: #{tpu_custom_call.1} parent=1 // pred_check
      %p211 = pneg %p210
    $region11: #{tpu_custom_call.1} parent=1 // pred_check_branch
      %213 = sbr.rel (%p211) target = $region13
    $region12: #{tpu_custom_call.1} parent=1 // pred_region
      %vm214 = vcmp.eq.s32.totalorder %v52, 0
      %vm215 = vcmp.eq.s32.totalorder %v53, 0
      %v216 = vsel %vm214, 0.0, %v174
      %v217 = vsel %vm215, 0.0, %v175
      %v218 = vsel %vm214, 0.0, %v176
      %v219 = vsel %vm215, 0.0, %v177
      %v220 = vsel %vm214, 0.0, %v178
      %v221 = vsel %vm215, 0.0, %v179
      %v222 = vsel %vm214, 0.0, %v180
      %v223 = vsel %vm215, 0.0, %v181
      %v224 = vsel %vm214, 0.0, %v182
      %v225 = vsel %vm215, 0.0, %v183
      %v226 = vsel %vm214, 0.0, %v184
      %v227 = vsel %vm215, 0.0, %v185
      %v228 = vsel %vm214, 0.0, %v186
      %v229 = vsel %vm215, 0.0, %v187
      %v230 = vsel %vm214, 0.0, %v188
      %v231 = vsel %vm215, 0.0, %v189
      %232 = vst [vmem:[#allocation2] sm:$0xff] %v216
      %233 = vst [vmem:[#allocation2 + $0x8] sm:$0xff] %v217
      %234 = vst [vmem:[#allocation2 + $0x10] sm:$0xff] %v218
      %235 = vst [vmem:[#allocation2 + $0x18] sm:$0xff] %v219
      %236 = vst [vmem:[#allocation2 + $0x20] sm:$0xff] %v220
      %237 = vst [vmem:[#allocation2 + $0x28] sm:$0xff] %v221
      %238 = vst [vmem:[#allocation2 + $0x30] sm:$0xff] %v222
      %239 = vst [vmem:[#allocation2 + $0x38] sm:$0xff] %v223
      %240 = vst [vmem:[#allocation2 + $0x40] sm:$0xff] %v224
      %241 = vst [vmem:[#allocation2 + $0x48] sm:$0xff] %v225
      %242 = vst [vmem:[#allocation2 + $0x50] sm:$0xff] %v226
      %243 = vst [vmem:[#allocation2 + $0x58] sm:$0xff] %v227
      %244 = vst [vmem:[#allocation2 + $0x60] sm:$0xff] %v228
      %245 = vst [vmem:[#allocation2 + $0x68] sm:$0xff] %v229
      %246 = vst [vmem:[#allocation2 + $0x70] sm:$0xff] %v230
      %247 = vst [vmem:[#allocation2 + $0x78] sm:$0xff] %v231
    $region13: #{tpu_custom_call.1} parent=1 // pred_fallthru
      _
    // Predicated region
    $region14: #{tpu_custom_call.1} parent=1 // pred_check
      _
    $region15: #{tpu_custom_call.1} parent=1 // pred_check_branch
      %249 = sbr.rel (0) target = $region17
    $region16: #{tpu_custom_call.1} parent=1 // pred_region
      %s251 = ssub.s32 2048, 2048
      %252 = vsyncadd [#allocation3], %s251
      %s253 = sshll.u32 [#allocation2], 4
      %s254 = int_to_ptr.vmem [resolvable:$true] %s253
      %259 = dma.vmem_to_hbm [thread:$0]  %s254, 2048, %s1, [#allocation3], 256, 256, 16
    $region17: #{tpu_custom_call.1} parent=1 // pred_fallthru
      _
    // Predicated region
    $region18: #{tpu_custom_call.1} parent=1 // pred_check
      _
    $region19: #{tpu_custom_call.1} parent=1 // pred_check_branch
      %261 = sbr.rel (0) target = $region21
    $region20: #{tpu_custom_call.1} parent=1 // pred_region
      %262 = dma.done [#allocation3], 2048
    $region21: #{tpu_custom_call.1} parent=1 // pred_fallthru
      _
    %263 = vsyncpa [#allocation3], 1

</llo_original>
